<compile_context>
chip_gen: v6e
topology: v6e:2x2x1
jax: 0.10.0
libtpu: 0.0.40
codegen_flags: <defaults>
</compile_context>

<pallas_src>
from functools import partial

import jax
import jax.numpy as jnp
from jax.experimental import pallas as pl
from jax.experimental.pallas import tpu as pltpu


# ~16 MiB double-buffered VMEM footprint at f32 (x + out blocks, lane-padded),
# safe on v5e/v6e (128 MiB) and v7x (64 MiB physical / 32 MiB scoped).
_MAX_BATCH_TILE = 8192


def _round_up(n, m):
    return ((n + m - 1) // m) * m


def _pick_batch_tile(batch):
    if batch <= _MAX_BATCH_TILE:
        return _round_up(batch, 8)     # sublane-aligned single tile
    return _MAX_BATCH_TILE


def _batch_axis_semantics():
    # Only CORE_PARALLEL actually shards a grid axis across v7x's two
    # TensorCores; "parallel" is kept for single-TC generations.
    try:
        kind = jax.devices()[0].device_kind.lower()
    except Exception:  # pragma: no cover - defensive, keep compiling anywhere
        kind = ""
    if "v7" in kind:
        return (pltpu.CORE_PARALLEL,)
    return ("parallel",)


def _fused_qat_linear_kernel(x_ref, p_ref, o_ref, *, in_f, out_f):
    # x_ref: [bt, in_f]   p_ref: [4, 16] packed params   o_ref: [bt, out_f]
    x = x_ref[...]                               # [bt, in_f]
    w1 = p_ref[0:1, 0:in_f]                      # [1, in_f]
    b1 = p_ref[1:2, 0:1]                         # [1, 1]
    w2 = p_ref[2:3, 0:out_f]                     # [1, out_f]
    b2 = p_ref[3:4, 0:out_f]                     # [1, out_f]

    # fc1: h[bt,1] = sum_k x[:,k]*w1[k] + b1   (VPU mul + small lane reduce)
    h = jnp.sum(x * w1, axis=1, keepdims=True) + b1
    # fc2: out[bt,out_f] = h*w2 + b2           (broadcast outer product, VPU)
    o_ref[...] = (h * w2 + b2).astype(o_ref.dtype)


def manual_linear_qat_forward(x, w1, b1, w2, b2):
    """Forward of ManualLinearQATModel (float eager mode).

    x : [B, 5]  f32
    w1: [1, 5]  fc1.weight (PyTorch layout), b1: [1]  fc1.bias
    w2: [10, 1] fc2.weight (PyTorch layout), b2: [10] fc2.bias
    returns [B, 10]
    """
    B, in_f = x.shape
    hidden = w1.shape[0]
    out_f = w2.shape[0]
    assert hidden == 1, "kernel is specialized for fc1 = Linear(in_f, 1)"

    # Pack all 26 parameters into one tiny resident block.
    params = jnp.zeros((4, 16), dtype=jnp.float32)
    params = params.at[0, :in_f].set(w1.reshape(in_f).astype(jnp.float32))
    params = params.at[1, 0].set(b1.reshape(hidden)[0].astype(jnp.float32))
    params = params.at[2, :out_f].set(w2.reshape(out_f).astype(jnp.float32))
    params = params.at[3, :out_f].set(b2.reshape(out_f).astype(jnp.float32))

    bt = _pick_batch_tile(B)
    padded_b = _round_up(B, bt)
    xp = x if padded_b == B else jnp.pad(x, ((0, padded_b - B), (0, 0)))
    grid = (padded_b // bt,)

    cost = pl.CostEstimate(
        flops=2 * padded_b * (in_f * hidden + hidden * out_f),
        transcendentals=0,
        bytes_accessed=padded_b * (in_f + out_f) * 4 + params.size * 4,
    )

    out = pl.pallas_call(
        partial(_fused_qat_linear_kernel, in_f=in_f, out_f=out_f),
        out_shape=jax.ShapeDtypeStruct((padded_b, out_f), x.dtype),
        grid_spec=pltpu.PrefetchScalarGridSpec(
            num_scalar_prefetch=0,
            grid=grid,
            in_specs=[
                # x tile: batch-major, no wrapper transpose.
                # (sweep knob: pipeline_mode=pl.Buffered(3) if DMA is exposed)
                pl.BlockSpec((bt, in_f), lambda i: (i, 0)),
                # packed params: resident across the whole grid.
                pl.BlockSpec((4, 16), lambda i: (0, 0)),
            ],
            out_specs=pl.BlockSpec((bt, out_f), lambda i: (i, 0)),
        ),
        compiler_params=pltpu.CompilerParams(
            dimension_semantics=_batch_axis_semantics(),
            vmem_limit_bytes=32 * 1024 * 1024,
        ),
        cost_estimate=cost,
    )(xp, params)

    return out if padded_b == B else out[:B]


if __name__ == "__main__":
    key = jax.random.PRNGKey(0)
    k_x, k_w1, k_b1, k_w2, k_b2, k_x2 = jax.random.split(key, 6)

    in_features, hidden, out_features = 5, 1, 10
    batch = 8

    # Deterministic parameter init mimicking torch.nn.Linear defaults
    # (uniform in [-1/sqrt(fan_in), 1/sqrt(fan_in)]).
    bound1 = 1.0 / jnp.sqrt(jnp.float32(in_features))
    w1 = jax.random.uniform(k_w1, (hidden, in_features), jnp.float32, -bound1, bound1)
    b1 = jax.random.uniform(k_b1, (hidden,), jnp.float32, -bound1, bound1)

    bound2 = 1.0 / jnp.sqrt(jnp.float32(hidden))
    w2 = jax.random.uniform(k_w2, (out_features, hidden), jnp.float32, -bound2, bound2)
    b2 = jax.random.uniform(k_b2, (out_features,), jnp.float32, -bound2, bound2)

    def ref_forward(xx):
        # Reference (plain JAX): quant/dequant stubs are identity in float mode.
        return (xx @ w1.T + b1) @ w2.T + b2

    # Small batch matching the module's Linear(5,1) -> Linear(1,10).
    x = jax.random.normal(k_x, (batch, in_features), jnp.float32)
    out = jax.block_until_ready(manual_linear_qat_forward(x, w1, b1, w2, b2))
    assert out.shape == (batch, out_features)
    assert jnp.allclose(out, ref_forward(x), atol=1e-5, rtol=1e-5), "mismatch vs reference"

    # Non-multiple-of-8 batch exercises the padded-tail path.
    x2 = jax.random.normal(k_x2, (203, in_features), jnp.float32)
    out2 = jax.block_until_ready(manual_linear_qat_forward(x2, w1, b1, w2, b2))
    assert out2.shape == (203, out_features)
    assert jnp.allclose(out2, ref_forward(x2), atol=1e-5, rtol=1e-5), "mismatch vs reference (padded)"

    print("KERNEL_OK")
</pallas_src>

<mosaic_0001>
module attributes {stable_mosaic.version = 11 : i64} {
  func.func @_fused_qat_linear_kernel(%arg0: i32, %arg1: memref<8x5xf32, #tpu.memory_space<vmem>>, %arg2: memref<4x16xf32, #tpu.memory_space<vmem>>, %arg3: memref<8x10xf32, #tpu.memory_space<vmem>>) attributes {dimension_semantics = [#tpu.dimension_semantics<parallel>], iteration_bounds = array<i64: 1>, scalar_prefetch = 0 : i64, scratch_operands = 0 : i64, tpu.core_type = #tpu.core_type<tc>, window_params = [{transform_indices = @transform_0, window_bounds = array<i64: 8, 5>}, {pipeline_mode = #tpu.pipeline_mode<synchronous>, transform_indices = @transform_1, window_bounds = array<i64: 4, 16>}, {transform_indices = @transform_2, window_bounds = array<i64: 8, 10>}]} {
    %c0 = arith.constant 0 : index
    %c0_0 = arith.constant 0 : index
    %0 = vector.load %arg1[%c0, %c0_0] : memref<8x5xf32, #tpu.memory_space<vmem>>, vector<8x5xf32>
    %c0_1 = arith.constant 0 : index
    %c0_2 = arith.constant 0 : index
    %1 = vector.load %arg2[%c0_1, %c0_2] : memref<4x16xf32, #tpu.memory_space<vmem>>, vector<1x5xf32>
    %c1 = arith.constant 1 : index
    %c0_3 = arith.constant 0 : index
    %2 = vector.load %arg2[%c1, %c0_3] : memref<4x16xf32, #tpu.memory_space<vmem>>, vector<1x1xf32>
    %c2 = arith.constant 2 : index
    %c0_4 = arith.constant 0 : index
    %3 = vector.load %arg2[%c2, %c0_4] : memref<4x16xf32, #tpu.memory_space<vmem>>, vector<1x10xf32>
    %c3 = arith.constant 3 : index
    %c0_5 = arith.constant 0 : index
    %4 = vector.load %arg2[%c3, %c0_5] : memref<4x16xf32, #tpu.memory_space<vmem>>, vector<1x10xf32>
    %5 = vector.broadcast %1 : vector<1x5xf32> to vector<8x5xf32>
    %6 = arith.mulf %0, %5 : vector<8x5xf32>
    %cst = arith.constant dense<0.000000e+00> : vector<8xf32>
    %7 = vector.multi_reduction <add>, %6, %cst [1] : vector<8x5xf32> to vector<8xf32>
    %8 = vector.shape_cast %7 : vector<8xf32> to vector<8x1xf32>
    %9 = vector.broadcast %2 : vector<1x1xf32> to vector<8x1xf32>
    %10 = arith.addf %8, %9 : vector<8x1xf32>
    %11 = vector.broadcast %10 : vector<8x1xf32> to vector<8x10xf32>
    %12 = vector.broadcast %3 : vector<1x10xf32> to vector<8x10xf32>
    %13 = arith.mulf %11, %12 : vector<8x10xf32>
    %14 = vector.broadcast %4 : vector<1x10xf32> to vector<8x10xf32>
    %15 = arith.addf %13, %14 : vector<8x10xf32>
    %c0_6 = arith.constant 0 : index
    %c0_7 = arith.constant 0 : index
    %16 = vector.load %arg3[%c0_6, %c0_7] : memref<8x10xf32, #tpu.memory_space<vmem>>, vector<8x10xf32>
    tpu.vector_store %arg3[%c0_6, %c0_7], %15 {strides = array<i32>} : memref<8x10xf32, #tpu.memory_space<vmem>>, vector<8x10xf32>,
    return
  }
  func.func @transform_0(%arg0: i32) -> (i32, i32) {
    %c0_i32 = arith.constant 0 : i32
    %c0_i32_0 = arith.constant 0 : i32
    return %arg0, %c0_i32 : i32, i32
  }
  func.func @transform_1(%arg0: i32) -> (i32, i32) {
    %c0_i32 = arith.constant 0 : i32
    %c0_i32_0 = arith.constant 0 : i32
    %c0_i32_1 = arith.constant 0 : i32
    return %c0_i32, %c0_i32_0 : i32, i32
  }
  func.func @transform_2(%arg0: i32) -> (i32, i32) {
    %c0_i32 = arith.constant 0 : i32
    %c0_i32_0 = arith.constant 0 : i32
    return %arg0, %c0_i32 : i32, i32
  }
}

</mosaic_0001>

<llo_original>
// kernel: tpu_custom_call.1
$region0: #{tpu_custom_call.1}
  #allocation0 [shape = 'u32[]', space=smem, size = 0x4, offset = 0x4, fixed_abs, tag = 'smem constant byte address 0x4 - core index']
  #allocation1 [shape = 'u32[144,128]{1,0:T(1,128)}', space=vmem, size = 0x12000, scoped, tag = 'internal scratch']
  %s0 = inlined_call_operand.hbm [shape: f32[8,5], index: 0, kind: input, shape index: {}]
  %s1 = inlined_call_operand.hbm [shape: f32[4,16], index: 1, kind: input, shape index: {}]
  %s2 = inlined_call_operand.hbm [shape: f32[8,10], index: 2, kind: output, shape index: {}]
  %s3 = sld [smem:[#allocation0]]
  $region26: #{tpu_custom_call.1} parent=0
    _
  %s5 = ssub.s32 1, %s3
  %s6 = scalar_select 0, %s5, %s3
  $region1: #{tpu_custom_call.1} parent=0
    #allocation2 [shape = 'u8[4096]{0}', space=vmem, size = 0x1000, scoped, tag = 'input window, operand 0, single buffered']
    #allocation3 [shape = 's32[1]{0}', space=sflag, size = 0x4, scoped, tag = 'scoped memory for tpu_custom_call.1']
    #allocation4 [shape = 's32[1]{0}', space=sflag, size = 0x4, scoped, tag = 'scoped memory for tpu_custom_call.1']
    #allocation5 [shape = 'u8[2048]{0}', space=vmem, size = 0x800, scoped, tag = 'input window, operand 1, single buffered']
    #allocation6 [shape = 's32[1]{0}', space=sflag, size = 0x4, scoped, tag = 'scoped memory for tpu_custom_call.1']
    #allocation7 [shape = 'u8[4096]{0}', space=vmem, size = 0x1000, scoped, tag = 'output window, operand 0, single buffered']
    %7 = vsyncpa [#allocation3], 0
    %8 = vsyncpa [#allocation6], 0
    %9 = vsyncpa [#allocation4], 0
    // Predicated region
    $region2: #{tpu_custom_call.1} parent=1 // pred_check
      _
    $region3: #{tpu_custom_call.1} parent=1 // pred_check_branch
      %11 = sbr.rel (0) target = $region5
    $region4: #{tpu_custom_call.1} parent=1 // pred_region
      %s13 = ssub.s32 128, 128
      %14 = vsyncadd [#allocation3], %s13
      %s16 = sshll.u32 [#allocation2], 4
      %s17 = int_to_ptr.vmem [resolvable:$true] %s16
      %19 = dma.hbm_to_vmem [thread:$0]  %s0, 128, %s17, [#allocation3]
    $region5: #{tpu_custom_call.1} parent=1 // pred_fallthru
      _
    // Predicated region
    $region6: #{tpu_custom_call.1} parent=1 // pred_check
      _
    $region7: #{tpu_custom_call.1} parent=1 // pred_check_branch
      %21 = sbr.rel (0) target = $region9
    $region8: #{tpu_custom_call.1} parent=1 // pred_region
      %s23 = ssub.s32 64, 64
      %24 = vsyncadd [#allocation6], %s23
      %s26 = sshll.u32 [#allocation5], 4
      %s27 = int_to_ptr.vmem [resolvable:$true] %s26
      %29 = dma.hbm_to_vmem [thread:$0]  %s1, 64, %s27, [#allocation6]
    $region9: #{tpu_custom_call.1} parent=1 // pred_fallthru
      _
    // Predicated region
    $region10: #{tpu_custom_call.1} parent=1 // pred_check
      _
    $region11: #{tpu_custom_call.1} parent=1 // pred_check_branch
      %31 = sbr.rel (0) target = $region13
    $region12: #{tpu_custom_call.1} parent=1 // pred_region
      %32 = dma.done [#allocation3], 128
    $region13: #{tpu_custom_call.1} parent=1 // pred_fallthru
      _
    // Predicated region
    $region14: #{tpu_custom_call.1} parent=1 // pred_check
      _
    $region15: #{tpu_custom_call.1} parent=1 // pred_check_branch
      %34 = sbr.rel (0) target = $region17
    $region16: #{tpu_custom_call.1} parent=1 // pred_region
      %35 = dma.done [#allocation6], 64
    $region17: #{tpu_custom_call.1} parent=1 // pred_fallthru
      _
    %v36 = vld [vmem:[#allocation2] sm:$0xff]
    %v37 = vld [vmem:[#allocation5] sm:$0x1]
    %v38 = vld [vmem:[#allocation5 + $0x1] sm:$0x1]
    %v39 = vld [vmem:[#allocation5 + $0x2] sm:$0x1]
    %v40 = vld [vmem:[#allocation5 + $0x3] sm:$0x1]
    %v41 = vlaneseq
    %v42 = vshrl.u32 %v41, 7
    %v43 = vsub.s32 0, %v42
    %v44 = vrot.slane %v37, %v43
    %v45 = vmul.f32 %v36, %v44
    %vm46 = vcmask 39936
    %v47 = vsel %vm46, %v45, 0.0
    %48 = vadd.xlane.f32.xlu0 %v47
    %v49 = vpop.xlane.xlu0 %48
    %v50 = vlaneseq
    %v51 = vshrl.u32 %v50, 7
    %v52 = vsub.s32 0, %v51
    %v53 = vrot.slane %v38, %v52
    %v54 = vadd.f32 %v49, %v53
    %56 = vset.pattern.permute.xlu0 0
    %57 = vperm.xlu0 %56, %v54
    %v58 = vpop.permute.xlu0 %57
    %v60 = vlaneseq
    %v61 = vshrl.u32 %v60, 7
    %v62 = vsub.s32 0, %v61
    %v63 = vrot.slane %v39, %v62
    %v64 = vmul.f32 %v58, %v63
    %v65 = vlaneseq
    %v66 = vshrl.u32 %v65, 7
    %v67 = vsub.s32 0, %v66
    %v68 = vrot.slane %v40, %v67
    %v69 = vadd.f32 %v64, %v68
    %vm70 = vcmask 80896
    %71 = vst.msk [vmem:[#allocation7] sm:$0xff] %vm70, %v69
    // Predicated region
    $region18: #{tpu_custom_call.1} parent=1 // pred_check
      _
    $region19: #{tpu_custom_call.1} parent=1 // pred_check_branch
      %73 = sbr.rel (0) target = $region21
    $region20: #{tpu_custom_call.1} parent=1 // pred_region
      %s75 = ssub.s32 128, 128
      %76 = vsyncadd [#allocation4], %s75
      %s78 = sshll.u32 [#allocation7], 4
      %s79 = int_to_ptr.vmem [resolvable:$true] %s78
      %81 = dma.vmem_to_hbm [thread:$0]  %s79, 128, %s2, [#allocation4]
    $region21: #{tpu_custom_call.1} parent=1 // pred_fallthru
      _
    // Predicated region
    $region22: #{tpu_custom_call.1} parent=1 // pred_check
      _
    $region23: #{tpu_custom_call.1} parent=1 // pred_check_branch
      %83 = sbr.rel (0) target = $region25
    $region24: #{tpu_custom_call.1} parent=1 // pred_region
      %84 = dma.done [#allocation4], 128
    $region25: #{tpu_custom_call.1} parent=1 // pred_fallthru
      _
    %85 = vsyncpa [#allocation3], 1
    %86 = vsyncpa [#allocation6], 1
    %87 = vsyncpa [#allocation4], 1

</llo_original>
